<compile_context>
chip_gen: v5e
topology: v5e:2x2
jax: 0.10.0
libtpu: 0.0.40
codegen_flags: <defaults>
</compile_context>

<pallas_src>
import jax
import jax.numpy as jnp
from jax.experimental import pallas as pl
from jax.experimental.pallas import tpu as pltpu

SELU_ALPHA = 1.6732632423543772
SELU_SCALE = 1.0507009873554805
PACK = 8  # original rows folded into one lane-dense packed row (8 * 16 = 128 lanes)


def _selu(x):
    # torch.nn.SELU semantics; exp argument clamped so the discarded positive
    # branch never produces inf (also keeps garbage rows of a partial tile finite).
    neg = SELU_ALPHA * (jnp.exp(jnp.minimum(x, 0.0)) - 1.0)
    return SELU_SCALE * (jnp.maximum(x, 0.0) + neg)


def _mlp_tail(h, w2_ref, b2_ref, w3_ref, b3_ref, w4_ref, b4_ref, o_ref):
    h = _selu(h)
    h = _selu(jnp.dot(h, w2_ref[...], preferred_element_type=jnp.float32) + b2_ref[...])
    h = _selu(jnp.dot(h, w3_ref[...], preferred_element_type=jnp.float32) + b3_ref[...])
    o_ref[...] = (jnp.dot(h, w4_ref[...], preferred_element_type=jnp.float32)
                  + b4_ref[...]).astype(o_ref.dtype)


def _mlp_scalar_t_kernel(t_ref, x_ref,
                         w1_ref, w1t_ref, b1_ref,
                         w2_ref, b2_ref, w3_ref, b3_ref, w4_ref, b4_ref,
                         o_ref):
    """Packed MLP; scalar time read from SMEM (scalar prefetch) and folded into layer 1."""
    t = t_ref[0]
    h = (jnp.dot(x_ref[...], w1_ref[...], preferred_element_type=jnp.float32)
         + t * w1t_ref[...]
         + b1_ref[...])
    _mlp_tail(h, w2_ref, b2_ref, w3_ref, b3_ref, w4_ref, b4_ref, o_ref)


def _mlp_vector_t_kernel(x_ref, t_ref,
                         w1_ref, w1t_ref, b1_ref,
                         w2_ref, b2_ref, w3_ref, b3_ref, w4_ref, b4_ref,
                         o_ref):
    """Packed MLP; per-row time streamed as (tile, PACK) and folded via kron(I, w1t)."""
    h = (jnp.dot(x_ref[...], w1_ref[...], preferred_element_type=jnp.float32)
         + jnp.dot(t_ref[...], w1t_ref[...], preferred_element_type=jnp.float32)
         + b1_ref[...])
    _mlp_tail(h, w2_ref, b2_ref, w3_ref, b3_ref, w4_ref, b4_ref, o_ref)


def _mlp_kernel(x_ref,
                w1_ref, b1_ref,
                w2_ref, b2_ref, w3_ref, b3_ref, w4_ref, b4_ref,
                o_ref):
    """Packed MLP, no time input (func.time_varying == False)."""
    h = jnp.dot(x_ref[...], w1_ref[...], preferred_element_type=jnp.float32) + b1_ref[...]
    _mlp_tail(h, w2_ref, b2_ref, w3_ref, b3_ref, w4_ref, b4_ref, o_ref)


def _round_up(n, m):
    return ((n + m - 1) // m) * m


def _choose_packed_tile(bp, min_rows=128, max_rows=2048, target_steps=8):
    """Pick the packed-row tile: whole batch when small, otherwise multiple
    grid steps (even count, for a balanced v7x dual-TC split)."""
    if bp <= min_rows:
        return bp                                   # single full-extent block
    tile = _round_up(pl.cdiv(bp, target_steps), 8)
    tile = min(max(tile, min_rows), max_rows)
    steps = pl.cdiv(bp, tile)
    if steps > 1 and steps % 2:
        tile = _round_up(pl.cdiv(bp, steps + 1), 8)
    return max(8, tile)


def init_mlp_params(key, dim, out_dim, hidden, time_varying=True):
    """Deterministic synthetic parameters (shapes match the torch MLP __init__)."""
    in_dim = dim + (1 if time_varying else 0)
    sizes = [(in_dim, hidden), (hidden, hidden), (hidden, hidden), (hidden, out_dim)]
    params = []
    for fan_in, fan_out in sizes:
        kw, kb, key = jax.random.split(key, 3)
        bound = 1.0 / jnp.sqrt(fan_in)
        w = jax.random.uniform(kw, (fan_in, fan_out), jnp.float32, -bound, bound)
        b = jax.random.uniform(kb, (1, fan_out), jnp.float32, -bound, bound)
        params.append((w, b))
    return params


def pack_params(params, dim, time_varying=True, pack=PACK):
    """One-time lane-dense repack: block-diagonalize the tiny MLP weights so the
    kernel runs on (B/pack, pack*dim) activations. Exact (zero blocks add nothing)."""
    (w1, b1), (w2, b2), (w3, b3), (w4, b4) = [
        (w.astype(jnp.float32), b.astype(jnp.float32)) for (w, b) in params
    ]
    eye = jnp.eye(pack, dtype=jnp.float32)
    if time_varying:
        w1x = w1[:dim, :]
        w1t = w1[dim:dim + 1, :]
        w1t_row = jnp.tile(w1t, (1, pack))    # (1, pack*hidden): scalar-t fold
        w1t_blk = jnp.kron(eye, w1t)          # (pack, pack*hidden): vector-t fold
    else:
        w1x, w1t_row, w1t_blk = w1, None, None
    return dict(
        pack=pack, dim=dim, hidden=w2.shape[0], out_dim=w4.shape[1],
        time_varying=time_varying,
        w1=jnp.kron(eye, w1x), b1=jnp.tile(b1, (1, pack)),
        w1t_row=w1t_row, w1t_blk=w1t_blk,
        w2=jnp.kron(eye, w2), b2=jnp.tile(b2, (1, pack)),
        w3=jnp.kron(eye, w3), b3=jnp.tile(b3, (1, pack)),
        w4=jnp.kron(eye, w4), b4=jnp.tile(b4, (1, pack)),
    )


def ode_wrapper_forward(t, x, packed):
    """JAX/Pallas equivalent of ODEwrapper.forward(t, x) with pre-packed params."""
    pack = packed["pack"]
    dim, hidden, out_dim = packed["dim"], packed["hidden"], packed["out_dim"]
    time_varying = packed["time_varying"]

    x = x.astype(jnp.float32)
    B = x.shape[0]
    B_pad = _round_up(B, pack)
    if B_pad != B:
        x = jnp.pad(x, ((0, B_pad - B), (0, 0)))
    bp = B_pad // pack
    xp = x.reshape(bp, pack * dim)                      # lane-dense view (free)

    tile = _choose_packed_tile(bp)
    grid = (pl.cdiv(bp, tile),)
    out_shape = jax.ShapeDtypeStruct((bp, pack * out_dim), jnp.float32)

    cparams = pltpu.CompilerParams(
        dimension_semantics=("parallel",),              # shard batch tiles across TCs
    )
    weight_bytes = 4 * ((dim + 1) * hidden + 2 * hidden * hidden + hidden * out_dim)
    cost = pl.CostEstimate(
        flops=2 * B_pad * (dim * hidden + 2 * hidden * hidden + hidden * out_dim),
        transcendentals=3 * B_pad * hidden,
        bytes_accessed=4 * B_pad * (dim + out_dim + (1 if time_varying else 0)) + weight_bytes,
    )

    def act_map(i, *_):
        return (i, 0)

    def resident(a):
        # Full-array block, constant index -> stays resident in VMEM.
        return pl.BlockSpec(a.shape, lambda i, *_: (0, 0))

    x_spec = pl.BlockSpec((tile, pack * dim), act_map)
    o_spec = pl.BlockSpec((tile, pack * out_dim), act_map)

    if time_varying:
        if jnp.ndim(t) == 0:
            # Scalar t (the ODE-solver case): t rides in SMEM via scalar
            # prefetch; b1_eff = b1 + t * w1t is one VPU op in-kernel.
            t_arr = jnp.reshape(jnp.asarray(t, jnp.float32), (1,))
            args = (t_arr, xp,
                    packed["w1"], packed["w1t_row"], packed["b1"],
                    packed["w2"], packed["b2"], packed["w3"], packed["b3"],
                    packed["w4"], packed["b4"])
            gs = pltpu.PrefetchScalarGridSpec(
                num_scalar_prefetch=1, grid=grid,
                in_specs=[x_spec] + [resident(a) for a in args[2:]],
                out_specs=o_spec)
            out_p = pl.pallas_call(
                _mlp_scalar_t_kernel, out_shape=out_shape, grid_spec=gs,
                compiler_params=cparams, cost_estimate=cost,
            )(*args)
        else:
            # Per-row time: stream a contiguous (B/pack, pack) view (no (tb,1)
            # lane-padded column) and fold via a tiny (tile,8)@(8,pack*hidden) matmul.
            t_col = jnp.reshape(t.astype(jnp.float32), (B, 1))
            if B_pad != B:
                t_col = jnp.pad(t_col, ((0, B_pad - B), (0, 0)))
            tp = t_col.reshape(bp, pack)
            t_spec = pl.BlockSpec((tile, pack), act_map)
            args = (xp, tp,
                    packed["w1"], packed["w1t_blk"], packed["b1"],
                    packed["w2"], packed["b2"], packed["w3"], packed["b3"],
                    packed["w4"], packed["b4"])
            gs = pltpu.PrefetchScalarGridSpec(
                num_scalar_prefetch=0, grid=grid,
                in_specs=[x_spec, t_spec] + [resident(a) for a in args[2:]],
                out_specs=o_spec)
            out_p = pl.pallas_call(
                _mlp_vector_t_kernel, out_shape=out_shape, grid_spec=gs,
                compiler_params=cparams, cost_estimate=cost,
            )(*args)
    else:
        args = (xp,
                packed["w1"], packed["b1"],
                packed["w2"], packed["b2"], packed["w3"], packed["b3"],
                packed["w4"], packed["b4"])
        gs = pltpu.PrefetchScalarGridSpec(
            num_scalar_prefetch=0, grid=grid,
            in_specs=[x_spec] + [resident(a) for a in args[1:]],
            out_specs=o_spec)
        out_p = pl.pallas_call(
            _mlp_kernel, out_shape=out_shape, grid_spec=gs,
            compiler_params=cparams, cost_estimate=cost,
        )(*args)

    out = out_p.reshape(B_pad, out_dim)                 # free view back to (B, out_dim)
    return out[:B] if B_pad != B else out


def _reference_forward(t, x, params, time_varying=True):
    """Pure-JAX reference of ODEwrapper.forward, for a sanity check."""
    x = x.astype(jnp.float32)
    if time_varying:
        if jnp.ndim(t) == 0:
            time = jnp.full((x.shape[0], 1), t, dtype=jnp.float32)
        else:
            time = jnp.reshape(t.astype(jnp.float32), (x.shape[0], 1))
        h = jnp.concatenate([x, time], axis=-1)
    else:
        h = x
    (w1, b1), (w2, b2), (w3, b3), (w4, b4) = params
    h = _selu(h @ w1 + b1)
    h = _selu(h @ w2 + b2)
    h = _selu(h @ w3 + b3)
    return h @ w4 + b4


if __name__ == "__main__":
    key = jax.random.PRNGKey(0)
    k_x, k_p, k_t, k_x2, k_p2 = jax.random.split(key, 5)

    batch, dim, hidden, out_dim = 8, 16, 32, 16
    x = jax.random.normal(k_x, (batch, dim), jnp.float32)
    params = init_mlp_params(k_p, dim, out_dim, hidden, time_varying=True)
    packed = pack_params(params, dim, time_varying=True)

    # Case 1: scalar time (as passed by an ODE solver).
    t_scalar = jnp.float32(0.5)
    dxdt = jax.block_until_ready(ode_wrapper_forward(t_scalar, x, packed))
    ref = _reference_forward(t_scalar, x, params, time_varying=True)
    assert dxdt.shape == (batch, out_dim)
    assert jnp.allclose(dxdt, ref, atol=1e-4, rtol=1e-4)

    # Case 2: per-row time vector, batch not a multiple of 8 (exercises padding).
    batch2 = 12
    x2 = jax.random.normal(k_x2, (batch2, dim), jnp.float32)
    t_vec = jax.random.uniform(k_t, (batch2, 1), jnp.float32)
    dxdt_v = jax.block_until_ready(ode_wrapper_forward(t_vec, x2, packed))
    ref_v = _reference_forward(t_vec, x2, params, time_varying=True)
    assert dxdt_v.shape == (batch2, out_dim)
    assert jnp.allclose(dxdt_v, ref_v, atol=1e-4, rtol=1e-4)

    # Case 3: non-time-varying func (the `else` branch of ODEwrapper.forward).
    params_nt = init_mlp_params(k_p2, dim, out_dim, hidden, time_varying=False)
    packed_nt = pack_params(params_nt, dim, time_varying=False)
    dxdt_nt = jax.block_until_ready(ode_wrapper_forward(jnp.float32(0.0), x, packed_nt))
    ref_nt = _reference_forward(jnp.float32(0.0), x, params_nt, time_varying=False)
    assert dxdt_nt.shape == (batch, out_dim)
    assert jnp.allclose(dxdt_nt, ref_nt, atol=1e-4, rtol=1e-4)

    print("KERNEL_OK")
</pallas_src>

<mosaic_0001>
module attributes {stable_mosaic.version = 11 : i64} {
  func.func @_mlp_scalar_t_kernel(%arg0: i32, %arg1: memref<1xf32, #tpu.memory_space<smem>>, %arg2: memref<1x128xf32, #tpu.memory_space<vmem>>, %arg3: memref<128x256xf32, #tpu.memory_space<vmem>>, %arg4: memref<1x256xf32, #tpu.memory_space<vmem>>, %arg5: memref<1x256xf32, #tpu.memory_space<vmem>>, %arg6: memref<256x256xf32, #tpu.memory_space<vmem>>, %arg7: memref<1x256xf32, #tpu.memory_space<vmem>>, %arg8: memref<256x256xf32, #tpu.memory_space<vmem>>, %arg9: memref<1x256xf32, #tpu.memory_space<vmem>>, %arg10: memref<256x128xf32, #tpu.memory_space<vmem>>, %arg11: memref<1x128xf32, #tpu.memory_space<vmem>>, %arg12: memref<1x128xf32, #tpu.memory_space<vmem>>) attributes {dimension_semantics = [#tpu.dimension_semantics<parallel>], iteration_bounds = array<i64: 1>, scalar_prefetch = 1 : i64, scratch_operands = 0 : i64, tpu.core_type = #tpu.core_type<tc>, window_params = [{transform_indices = @transform_0, window_bounds = array<i64: 1, 128>}, {pipeline_mode = #tpu.pipeline_mode<synchronous>, transform_indices = @transform_1, window_bounds = array<i64: 128, 256>}, {pipeline_mode = #tpu.pipeline_mode<synchronous>, transform_indices = @transform_2, window_bounds = array<i64: 1, 256>}, {pipeline_mode = #tpu.pipeline_mode<synchronous>, transform_indices = @transform_3, window_bounds = array<i64: 1, 256>}, {pipeline_mode = #tpu.pipeline_mode<synchronous>, transform_indices = @transform_4, window_bounds = array<i64: 256, 256>}, {pipeline_mode = #tpu.pipeline_mode<synchronous>, transform_indices = @transform_5, window_bounds = array<i64: 1, 256>}, {pipeline_mode = #tpu.pipeline_mode<synchronous>, transform_indices = @transform_6, window_bounds = array<i64: 256, 256>}, {pipeline_mode = #tpu.pipeline_mode<synchronous>, transform_indices = @transform_7, window_bounds = array<i64: 1, 256>}, {pipeline_mode = #tpu.pipeline_mode<synchronous>, transform_indices = @transform_8, window_bounds = array<i64: 256, 128>}, {pipeline_mode = #tpu.pipeline_mode<synchronous>, transform_indices = @transform_9, window_bounds = array<i64: 1, 128>}, {transform_indices = @transform_10, window_bounds = array<i64: 1, 128>}]} {
    %c0 = arith.constant 0 : index
    %0 = memref.load %arg1[%c0] : memref<1xf32, #tpu.memory_space<smem>>
    %c0_0 = arith.constant 0 : index
    %c0_1 = arith.constant 0 : index
    %1 = vector.load %arg2[%c0_0, %c0_1] : memref<1x128xf32, #tpu.memory_space<vmem>>, vector<1x128xf32>
    %c0_2 = arith.constant 0 : index
    %c0_3 = arith.constant 0 : index
    %2 = vector.load %arg3[%c0_2, %c0_3] : memref<128x256xf32, #tpu.memory_space<vmem>>, vector<128x256xf32>
    %cst = arith.constant dense<0.000000e+00> : vector<1x256xf32>
    %3 = tpu.matmul %1, %2, %cst {dimension_numbers = #tpu.dot_dimension_numbers<[1], [0], [0], [1], [0, 0, 1, 1], [], []>} : vector<1x128xf32>, vector<128x256xf32>, vector<1x256xf32> -> vector<1x256xf32>
    %c0_4 = arith.constant 0 : index
    %c0_5 = arith.constant 0 : index
    %4 = vector.load %arg4[%c0_4, %c0_5] : memref<1x256xf32, #tpu.memory_space<vmem>>, vector<1x256xf32>
    %5 = vector.broadcast %0 : f32 to vector<1x256xf32>
    %6 = arith.mulf %5, %4 : vector<1x256xf32>
    %7 = arith.addf %3, %6 : vector<1x256xf32>
    %c0_6 = arith.constant 0 : index
    %c0_7 = arith.constant 0 : index
    %8 = vector.load %arg5[%c0_6, %c0_7] : memref<1x256xf32, #tpu.memory_space<vmem>>, vector<1x256xf32>
    %9 = arith.addf %7, %8 : vector<1x256xf32>
    %cst_8 = arith.constant 0.000000e+00 : f32
    %10 = vector.broadcast %cst_8 : f32 to vector<1x256xf32>
    %11 = arith.minimumf %9, %10 : vector<1x256xf32>
    %12 = math.exp %11 : vector<1x256xf32>
    %cst_9 = arith.constant 1.000000e+00 : f32
    %13 = vector.broadcast %cst_9 : f32 to vector<1x256xf32>
    %14 = arith.subf %12, %13 : vector<1x256xf32>
    %cst_10 = arith.constant 1.67326319 : f32
    %15 = vector.broadcast %cst_10 : f32 to vector<1x256xf32>
    %16 = arith.mulf %15, %14 : vector<1x256xf32>
    %cst_11 = arith.constant 0.000000e+00 : f32
    %17 = vector.broadcast %cst_11 : f32 to vector<1x256xf32>
    %18 = arith.maximumf %9, %17 : vector<1x256xf32>
    %19 = arith.addf %18, %16 : vector<1x256xf32>
    %cst_12 = arith.constant 1.05070102 : f32
    %20 = vector.broadcast %cst_12 : f32 to vector<1x256xf32>
    %21 = arith.mulf %20, %19 : vector<1x256xf32>
    %c0_13 = arith.constant 0 : index
    %c0_14 = arith.constant 0 : index
    %22 = vector.load %arg6[%c0_13, %c0_14] : memref<256x256xf32, #tpu.memory_space<vmem>>, vector<256x256xf32>
    %cst_15 = arith.constant dense<0.000000e+00> : vector<1x256xf32>
    %23 = tpu.matmul %21, %22, %cst_15 {dimension_numbers = #tpu.dot_dimension_numbers<[1], [0], [0], [1], [0, 0, 1, 1], [], []>} : vector<1x256xf32>, vector<256x256xf32>, vector<1x256xf32> -> vector<1x256xf32>
    %c0_16 = arith.constant 0 : index
    %c0_17 = arith.constant 0 : index
    %24 = vector.load %arg7[%c0_16, %c0_17] : memref<1x256xf32, #tpu.memory_space<vmem>>, vector<1x256xf32>
    %25 = arith.addf %23, %24 : vector<1x256xf32>
    %cst_18 = arith.constant 0.000000e+00 : f32
    %26 = vector.broadcast %cst_18 : f32 to vector<1x256xf32>
    %27 = arith.minimumf %25, %26 : vector<1x256xf32>
    %28 = math.exp %27 : vector<1x256xf32>
    %cst_19 = arith.constant 1.000000e+00 : f32
    %29 = vector.broadcast %cst_19 : f32 to vector<1x256xf32>
    %30 = arith.subf %28, %29 : vector<1x256xf32>
    %cst_20 = arith.constant 1.67326319 : f32
    %31 = vector.broadcast %cst_20 : f32 to vector<1x256xf32>
    %32 = arith.mulf %31, %30 : vector<1x256xf32>
    %cst_21 = arith.constant 0.000000e+00 : f32
    %33 = vector.broadcast %cst_21 : f32 to vector<1x256xf32>
    %34 = arith.maximumf %25, %33 : vector<1x256xf32>
    %35 = arith.addf %34, %32 : vector<1x256xf32>
    %cst_22 = arith.constant 1.05070102 : f32
    %36 = vector.broadcast %cst_22 : f32 to vector<1x256xf32>
    %37 = arith.mulf %36, %35 : vector<1x256xf32>
    %c0_23 = arith.constant 0 : index
    %c0_24 = arith.constant 0 : index
    %38 = vector.load %arg8[%c0_23, %c0_24] : memref<256x256xf32, #tpu.memory_space<vmem>>, vector<256x256xf32>
    %cst_25 = arith.constant dense<0.000000e+00> : vector<1x256xf32>
    %39 = tpu.matmul %37, %38, %cst_25 {dimension_numbers = #tpu.dot_dimension_numbers<[1], [0], [0], [1], [0, 0, 1, 1], [], []>} : vector<1x256xf32>, vector<256x256xf32>, vector<1x256xf32> -> vector<1x256xf32>
    %c0_26 = arith.constant 0 : index
    %c0_27 = arith.constant 0 : index
    %40 = vector.load %arg9[%c0_26, %c0_27] : memref<1x256xf32, #tpu.memory_space<vmem>>, vector<1x256xf32>
    %41 = arith.addf %39, %40 : vector<1x256xf32>
    %cst_28 = arith.constant 0.000000e+00 : f32
    %42 = vector.broadcast %cst_28 : f32 to vector<1x256xf32>
    %43 = arith.minimumf %41, %42 : vector<1x256xf32>
    %44 = math.exp %43 : vector<1x256xf32>
    %cst_29 = arith.constant 1.000000e+00 : f32
    %45 = vector.broadcast %cst_29 : f32 to vector<1x256xf32>
    %46 = arith.subf %44, %45 : vector<1x256xf32>
    %cst_30 = arith.constant 1.67326319 : f32
    %47 = vector.broadcast %cst_30 : f32 to vector<1x256xf32>
    %48 = arith.mulf %47, %46 : vector<1x256xf32>
    %cst_31 = arith.constant 0.000000e+00 : f32
    %49 = vector.broadcast %cst_31 : f32 to vector<1x256xf32>
    %50 = arith.maximumf %41, %49 : vector<1x256xf32>
    %51 = arith.addf %50, %48 : vector<1x256xf32>
    %cst_32 = arith.constant 1.05070102 : f32
    %52 = vector.broadcast %cst_32 : f32 to vector<1x256xf32>
    %53 = arith.mulf %52, %51 : vector<1x256xf32>
    %c0_33 = arith.constant 0 : index
    %c0_34 = arith.constant 0 : index
    %54 = vector.load %arg10[%c0_33, %c0_34] : memref<256x128xf32, #tpu.memory_space<vmem>>, vector<256x128xf32>
    %cst_35 = arith.constant dense<0.000000e+00> : vector<1x128xf32>
    %55 = tpu.matmul %53, %54, %cst_35 {dimension_numbers = #tpu.dot_dimension_numbers<[1], [0], [0], [1], [0, 0, 1, 1], [], []>} : vector<1x256xf32>, vector<256x128xf32>, vector<1x128xf32> -> vector<1x128xf32>
    %c0_36 = arith.constant 0 : index
    %c0_37 = arith.constant 0 : index
    %56 = vector.load %arg11[%c0_36, %c0_37] : memref<1x128xf32, #tpu.memory_space<vmem>>, vector<1x128xf32>
    %57 = arith.addf %55, %56 : vector<1x128xf32>
    %c0_38 = arith.constant 0 : index
    %c0_39 = arith.constant 0 : index
    %58 = vector.load %arg12[%c0_38, %c0_39] : memref<1x128xf32, #tpu.memory_space<vmem>>, vector<1x128xf32>
    tpu.vector_store %arg12[%c0_38, %c0_39], %57 {strides = array<i32>} : memref<1x128xf32, #tpu.memory_space<vmem>>, vector<1x128xf32>,
    return
  }
  func.func @transform_0(%arg0: i32, %arg1: memref<1xf32, #tpu.memory_space<smem>>) -> (i32, i32) {
    %c0_i32 = arith.constant 0 : i32
    %c0_i32_0 = arith.constant 0 : i32
    return %arg0, %c0_i32 : i32, i32
  }
  func.func @transform_1(%arg0: i32, %arg1: memref<1xf32, #tpu.memory_space<smem>>) -> (i32, i32) {
    %c0_i32 = arith.constant 0 : i32
    %c0_i32_0 = arith.constant 0 : i32
    %c0_i32_1 = arith.constant 0 : i32
    return %c0_i32, %c0_i32_0 : i32, i32
  }
  func.func @transform_2(%arg0: i32, %arg1: memref<1xf32, #tpu.memory_space<smem>>) -> (i32, i32) {
    %c0_i32 = arith.constant 0 : i32
    %c0_i32_0 = arith.constant 0 : i32
    %c0_i32_1 = arith.constant 0 : i32
    return %c0_i32, %c0_i32_0 : i32, i32
  }
  func.func @transform_3(%arg0: i32, %arg1: memref<1xf32, #tpu.memory_space<smem>>) -> (i32, i32) {
    %c0_i32 = arith.constant 0 : i32
    %c0_i32_0 = arith.constant 0 : i32
    %c0_i32_1 = arith.constant 0 : i32
    return %c0_i32, %c0_i32_0 : i32, i32
  }
  func.func @transform_4(%arg0: i32, %arg1: memref<1xf32, #tpu.memory_space<smem>>) -> (i32, i32) {
    %c0_i32 = arith.constant 0 : i32
    %c0_i32_0 = arith.constant 0 : i32
    %c0_i32_1 = arith.constant 0 : i32
    return %c0_i32, %c0_i32_0 : i32, i32
  }
  func.func @transform_5(%arg0: i32, %arg1: memref<1xf32, #tpu.memory_space<smem>>) -> (i32, i32) {
    %c0_i32 = arith.constant 0 : i32
    %c0_i32_0 = arith.constant 0 : i32
    %c0_i32_1 = arith.constant 0 : i32
    return %c0_i32, %c0_i32_0 : i32, i32
  }
  func.func @transform_6(%arg0: i32, %arg1: memref<1xf32, #tpu.memory_space<smem>>) -> (i32, i32) {
    %c0_i32 = arith.constant 0 : i32
    %c0_i32_0 = arith.constant 0 : i32
    %c0_i32_1 = arith.constant 0 : i32
    return %c0_i32, %c0_i32_0 : i32, i32
  }
  func.func @transform_7(%arg0: i32, %arg1: memref<1xf32, #tpu.memory_space<smem>>) -> (i32, i32) {
    %c0_i32 = arith.constant 0 : i32
    %c0_i32_0 = arith.constant 0 : i32
    %c0_i32_1 = arith.constant 0 : i32
    return %c0_i32, %c0_i32_0 : i32, i32
  }
  func.func @transform_8(%arg0: i32, %arg1: memref<1xf32, #tpu.memory_space<smem>>) -> (i32, i32) {
    %c0_i32 = arith.constant 0 : i32
    %c0_i32_0 = arith.constant 0 : i32
    %c0_i32_1 = arith.constant 0 : i32
    return %c0_i32, %c0_i32_0 : i32, i32
  }
  func.func @transform_9(%arg0: i32, %arg1: memref<1xf32, #tpu.memory_space<smem>>) -> (i32, i32) {
    %c0_i32 = arith.constant 0 : i32
    %c0_i32_0 = arith.constant 0 : i32
    %c0_i32_1 = arith.constant 0 : i32
    return %c0_i32, %c0_i32_0 : i32, i32
  }
  func.func @transform_10(%arg0: i32, %arg1: memref<1xf32, #tpu.memory_space<smem>>) -> (i32, i32) {
    %c0_i32 = arith.constant 0 : i32
    %c0_i32_0 = arith.constant 0 : i32
    return %arg0, %c0_i32 : i32, i32
  }
}

</mosaic_0001>

<llo_original>
// kernel: tpu_custom_call.1
$region0: #{tpu_custom_call.1}
  #allocation0 [shape = 'u32[]', space=smem, size = 0x4, offset = 0x4, fixed_abs, tag = 'smem constant byte address 0x4 - core index']
  #allocation1 [shape = 'u32[72,128]{1,0:T(1,128)}', space=vmem, size = 0x9000, scoped, tag = 'internal scratch']
  #allocation2 [shape = 's32[1]{0}', space=sflag, size = 0x4, scoped, tag = 'scoped memory for tpu_custom_call.1']
  #allocation3 [shape = 'f32[1]{0:T(128)S(6)}', space=smem, size = 0x200, scoped, tag = 'prefetched SMEM operand 0']
  %s0 = inlined_call_operand.<no memory space> [shape: f32[1], index: 0, kind: input, shape index: {}]
  %s1 = inlined_call_operand.hbm [shape: f32[1,128], index: 1, kind: input, shape index: {}]
  %s2 = inlined_call_operand.hbm [shape: f32[128,256], index: 2, kind: input, shape index: {}]
  %s3 = inlined_call_operand.vmem [shape: f32[1,256], index: 3, kind: input, shape index: {}]
  %s4 = inlined_call_operand.vmem [shape: f32[1,256], index: 4, kind: input, shape index: {}]
  %s5 = inlined_call_operand.hbm [shape: f32[256,256], index: 5, kind: input, shape index: {}]
  %s6 = inlined_call_operand.vmem [shape: f32[1,256], index: 6, kind: input, shape index: {}]
  %s7 = inlined_call_operand.hbm [shape: f32[256,256], index: 7, kind: input, shape index: {}]
  %s8 = inlined_call_operand.vmem [shape: f32[1,256], index: 8, kind: input, shape index: {}]
  %s9 = inlined_call_operand.hbm [shape: f32[256,128], index: 9, kind: input, shape index: {}]
  %s10 = inlined_call_operand.vmem [shape: f32[1,128], index: 10, kind: input, shape index: {}]
  %s11 = inlined_call_operand.hbm [shape: f32[1,128], index: 11, kind: output, shape index: {}]
  %s12 = sld [smem:[#allocation0]]
  $region70: #{tpu_custom_call.1} parent=0
    _
  %s14 = ssub.s32 1, %s12
  %s15 = scalar_select 0, %s14, %s12
  %16 = sst [smem:[#allocation3]] %s0
  $region1: #{tpu_custom_call.1} parent=0
    #allocation4 [shape = 'u8[512]{0}', space=vmem, size = 0x400, scoped, tag = 'input window, operand 1, single buffered']
    #allocation5 [shape = 's32[1]{0}', space=sflag, size = 0x4, scoped, tag = 'scoped memory for tpu_custom_call.1']
    #allocation6 [shape = 's32[1]{0}', space=sflag, size = 0x4, scoped, tag = 'scoped memory for tpu_custom_call.1']
    #allocation7 [shape = 'u8[131072]{0}', space=vmem, size = 0x20000, scoped, tag = 'input window, operand 2, single buffered']
    #allocation8 [shape = 's32[1]{0}', space=sflag, size = 0x4, scoped, tag = 'scoped memory for tpu_custom_call.1']
    #allocation9 [shape = 'u8[262144]{0}', space=vmem, size = 0x40000, scoped, tag = 'input window, operand 5, single buffered']
    #allocation10 [shape = 'u8[262144]{0}', space=vmem, size = 0x40000, scoped, tag = 'input window, operand 7, single buffered']
    #allocation11 [shape = 's32[1]{0}', space=sflag, size = 0x4, scoped, tag = 'scoped memory for tpu_custom_call.1']
    #allocation12 [shape = 'u8[131072]{0}', space=vmem, size = 0x20000, scoped, tag = 'input window, operand 9, single buffered']
    #allocation13 [shape = 'u8[512]{0}', space=vmem, size = 0x400, scoped, tag = 'output window, operand 0, single buffered']
    %17 = vsyncpa [#allocation5], 0
    %18 = vsyncpa [#allocation8], 0
    %19 = vsyncpa [#allocation11], 0
    %20 = vsyncpa [#allocation6], 0
    // Predicated region
    $region2: #{tpu_custom_call.1} parent=1 // pred_check
      _
    $region3: #{tpu_custom_call.1} parent=1 // pred_check_branch
      %22 = sbr.rel (0) target = $region5
    $region4: #{tpu_custom_call.1} parent=1 // pred_region
      %24 = vsyncadd [#allocation5], 0
      %s26 = sshll.u32 %s1, 4
      %s27 = int_to_ptr.hbm [resolvable:$true] %s26
      %s28 = sshll.u32 [#allocation4], 4
      %s29 = int_to_ptr.vmem [resolvable:$true] %s28
      %31 = dma.hbm_to_vmem [thread:$0]  %s27, 16, %s29, [#allocation5]
    $region5: #{tpu_custom_call.1} parent=1 // pred_fallthru
      _
    // Predicated region
    $region6: #{tpu_custom_call.1} parent=1 // pred_check
      _
    $region7: #{tpu_custom_call.1} parent=1 // pred_check_branch
      %33 = sbr.rel (0) target = $region9
    $region8: #{tpu_custom_call.1} parent=1 // pred_region
      %35 = vsyncadd [#allocation8], 0
      %s36 = sshll.u32 %s2, 4
      %s37 = int_to_ptr.hbm [resolvable:$true] %s36
      %s38 = sshll.u32 [#allocation7], 4
      %s39 = int_to_ptr.vmem [resolvable:$true] %s38
      %44 = dma.hbm_to_vmem [thread:$0]  %s37, 4096, %s39, [#allocation8], 256, 256, 16
    $region9: #{tpu_custom_call.1} parent=1 // pred_fallthru
      _
    // Predicated region
    $region10: #{tpu_custom_call.1} parent=1 // pred_check
      _
    $region11: #{tpu_custom_call.1} parent=1 // pred_check_branch
      %46 = sbr.rel (0) target = $region13
    $region12: #{tpu_custom_call.1} parent=1 // pred_region
      _
    $region13: #{tpu_custom_call.1} parent=1 // pred_fallthru
      _
    // Predicated region
    $region14: #{tpu_custom_call.1} parent=1 // pred_check
      _
    $region15: #{tpu_custom_call.1} parent=1 // pred_check_branch
      %48 = sbr.rel (0) target = $region17
    $region16: #{tpu_custom_call.1} parent=1 // pred_region
      _
    $region17: #{tpu_custom_call.1} parent=1 // pred_fallthru
      _
    // Predicated region
    $region18: #{tpu_custom_call.1} parent=1 // pred_check
      _
    $region19: #{tpu_custom_call.1} parent=1 // pred_check_branch
      %50 = sbr.rel (0) target = $region21
    $region20: #{tpu_custom_call.1} parent=1 // pred_region
      %52 = vsyncadd [#allocation8], 0
      %s53 = sshll.u32 %s5, 4
      %s54 = int_to_ptr.hbm [resolvable:$true] %s53
      %s55 = sshll.u32 [#allocation9], 4
      %s56 = int_to_ptr.vmem [resolvable:$true] %s55
      %61 = dma.hbm_to_vmem [thread:$0]  %s54, 8192, %s56, [#allocation8], 256, 256, 16
    $region21: #{tpu_custom_call.1} parent=1 // pred_fallthru
      _
    // Predicated region
    $region22: #{tpu_custom_call.1} parent=1 // pred_check
      _
    $region23: #{tpu_custom_call.1} parent=1 // pred_check_branch
      %63 = sbr.rel (0) target = $region25
    $region24: #{tpu_custom_call.1} parent=1 // pred_region
      _
    $region25: #{tpu_custom_call.1} parent=1 // pred_fallthru
      _
    // Predicated region
    $region26: #{tpu_custom_call.1} parent=1 // pred_check
      _
    $region27: #{tpu_custom_call.1} parent=1 // pred_check_branch
      %65 = sbr.rel (0) target = $region29
    $region28: #{tpu_custom_call.1} parent=1 // pred_region
      %67 = vsyncadd [#allocation11], 0
      %s68 = sshll.u32 %s7, 4
      %s69 = int_to_ptr.hbm [resolvable:$true] %s68
      %s70 = sshll.u32 [#allocation10], 4
      %s71 = int_to_ptr.vmem [resolvable:$true] %s70
      %76 = dma.hbm_to_vmem [thread:$0]  %s69, 8192, %s71, [#allocation11], 256, 256, 16
    $region29: #{tpu_custom_call.1} parent=1 // pred_fallthru
      _
    // Predicated region
    $region30: #{tpu_custom_call.1} parent=1 // pred_check
      _
    $region31: #{tpu_custom_call.1} parent=1 // pred_check_branch
      %78 = sbr.rel (0) target = $region33
    $region32: #{tpu_custom_call.1} parent=1 // pred_region
      _
    $region33: #{tpu_custom_call.1} parent=1 // pred_fallthru
      _
    // Predicated region
    $region34: #{tpu_custom_call.1} parent=1 // pred_check
      _
    $region35: #{tpu_custom_call.1} parent=1 // pred_check_branch
      %80 = sbr.rel (0) target = $region37
    $region36: #{tpu_custom_call.1} parent=1 // pred_region
      %82 = vsyncadd [#allocation11], 0
      %s83 = sshll.u32 %s9, 4
      %s84 = int_to_ptr.hbm [resolvable:$true] %s83
      %s85 = sshll.u32 [#allocation12], 4
      %s86 = int_to_ptr.vmem [resolvable:$true] %s85
      %91 = dma.hbm_to_vmem [thread:$0]  %s84, 4096, %s86, [#allocation11], 128, 128, 8
    $region37: #{tpu_custom_call.1} parent=1 // pred_fallthru
      _
    // Predicated region
    $region38: #{tpu_custom_call.1} parent=1 // pred_check
      _
    $region39: #{tpu_custom_call.1} parent=1 // pred_check_branch
      %93 = sbr.rel (0) target = $region41
    $region40: #{tpu_custom_call.1} parent=1 // pred_region
      _
    $region41: #{tpu_custom_call.1} parent=1 // pred_fallthru
      _
    // Predicated region
    $region42: #{tpu_custom_call.1} parent=1 // pred_check
      _
    $region43: #{tpu_custom_call.1} parent=1 // pred_check_branch
      %95 = sbr.rel (0) target = $region45
    $region44: #{tpu_custom_call.1} parent=1 // pred_region
      %97 = dma.done [#allocation5], 16
    $region45: #{tpu_custom_call.1} parent=1 // pred_fallthru
      _
    // Predicated region
    $region46: #{tpu_custom_call.1} parent=1 // pred_check
      _
    $region47: #{tpu_custom_call.1} parent=1 // pred_check_branch
      %99 = sbr.rel (0) target = $region49
    $region48: #{tpu_custom_call.1} parent=1 // pred_region
      %101 = dma.done [#allocation8], 4096
    $region49: #{tpu_custom_call.1} parent=1 // pred_fallthru
      _
    // Predicated region
    $region50: #{tpu_custom_call.1} parent=1 // pred_check
      _
    $region51: #{tpu_custom_call.1} parent=1 // pred_check_branch
      %103 = sbr.rel (0) target = $region53
    $region52: #{tpu_custom_call.1} parent=1 // pred_region
      %105 = dma.done [#allocation8], 8192
    $region53: #{tpu_custom_call.1} parent=1 // pred_fallthru
      _
    // Predicated region
    $region54: #{tpu_custom_call.1} parent=1 // pred_check
      _
    $region55: #{tpu_custom_call.1} parent=1 // pred_check_branch
      %107 = sbr.rel (0) target = $region57
    $region56: #{tpu_custom_call.1} parent=1 // pred_region
      %109 = dma.done [#allocation11], 8192
    $region57: #{tpu_custom_call.1} parent=1 // pred_fallthru
      _
    // Predicated region
    $region58: #{tpu_custom_call.1} parent=1 // pred_check
      _
    $region59: #{tpu_custom_call.1} parent=1 // pred_check_branch
      %111 = sbr.rel (0) target = $region61
    $region60: #{tpu_custom_call.1} parent=1 // pred_region
      %113 = dma.done [#allocation11], 4096
    $region61: #{tpu_custom_call.1} parent=1 // pred_fallthru
      _
    %s114 = sld [smem:[#allocation3]]
    %v115 = vld [vmem:[#allocation4] sm:$0x1]
    %v116 = vld [vmem:[#allocation7] sm:$0xff]
    %v117 = vld [vmem:[#allocation7 + $0x8] sm:$0xff]
    %v118 = vld [vmem:[#allocation7 + $0x10] sm:$0xff]
    %v119 = vld [vmem:[#allocation7 + $0x18] sm:$0xff]
    %v120 = vld [vmem:[#allocation7 + $0x20] sm:$0xff]
    %v121 = vld [vmem:[#allocation7 + $0x28] sm:$0xff]
    %v122 = vld [vmem:[#allocation7 + $0x30] sm:$0xff]
    %v123 = vld [vmem:[#allocation7 + $0x38] sm:$0xff]
    %v124 = vld [vmem:[#allocation7 + $0x40] sm:$0xff]
    %v125 = vld [vmem:[#allocation7 + $0x48] sm:$0xff]
    %v126 = vld [vmem:[#allocation7 + $0x50] sm:$0xff]
    %v127 = vld [vmem:[#allocation7 + $0x58] sm:$0xff]
    %v128 = vld [vmem:[#allocation7 + $0x60] sm:$0xff]
    %v129 = vld [vmem:[#allocation7 + $0x68] sm:$0xff]
    %v130 = vld [vmem:[#allocation7 + $0x70] sm:$0xff]
    %v131 = vld [vmem:[#allocation7 + $0x78] sm:$0xff]
    %v132 = vld [vmem:[#allocation7 + $0x80] sm:$0xff]
    %v133 = vld [vmem:[#allocation7 + $0x88] sm:$0xff]
    %v134 = vld [vmem:[#allocation7 + $0x90] sm:$0xff]
    %v135 = vld [vmem:[#allocation7 + $0x98] sm:$0xff]
    %v136 = vld [vmem:[#allocation7 + $0xa0] sm:$0xff]
    %v137 = vld [vmem:[#allocation7 + $0xa8] sm:$0xff]
    %v138 = vld [vmem:[#allocation7 + $0xb0] sm:$0xff]
    %v139 = vld [vmem:[#allocation7 + $0xb8] sm:$0xff]
    %v140 = vld [vmem:[#allocation7 + $0xc0] sm:$0xff]
    %v141 = vld [vmem:[#allocation7 + $0xc8] sm:$0xff]
    %v142 = vld [vmem:[#allocation7 + $0xd0] sm:$0xff]
    %v143 = vld [vmem:[#allocation7 + $0xd8] sm:$0xff]
    %v144 = vld [vmem:[#allocation7 + $0xe0] sm:$0xff]
    %v145 = vld [vmem:[#allocation7 + $0xe8] sm:$0xff]
    %v146 = vld [vmem:[#allocation7 + $0xf0] sm:$0xff]
    %v147 = vld [vmem:[#allocation7 + $0xf8] sm:$0xff]
    %v148 = vld [vmem:[%s3] sm:$0x3]
    %v149 = vstv %s114
    %v150 = vmul.f32 %v149, %v148
    %v152 = vperm.slane %v150, 0
    %v153 = vperm.slane %v150, 1
    %156 = vmatpush.msra.mxu0 %v146
    %157 = vmatpush.msra.mxu0 %v144
    %158 = vmatpush.msra.mxu0 %v142
    %159 = vmatpush.msra.mxu0 %v140
    %160 = vmatpush.msra.mxu0 %v138
    %161 = vmatpush.msra.mxu0 %v136
    %162 = vmatpush.msra.mxu0 %v134
    %163 = vmatpush.msra.mxu0 %v132
    %164 = vmatpush.msra.mxu0 %v130
    %165 = vmatpush.msra.mxu0 %v128
    %166 = vmatpush.msra.mxu0 %v126
    %167 = vmatpush.msra.mxu0 %v124
    %168 = vmatpush.msra.mxu0 %v122
    %169 = vmatpush.msra.mxu0 %v120
    %170 = vmatpush.msra.mxu0 %v118
    %171 = vmatpush.msra.mxu0 %v116
    %172 = vmatmul.f32.gmra.mxu0 %v115
    %v173 = vpop.f32.mrf.mxu0
    %v174 = vadd.f32 %v152, %v173
    %175 = vdwg.mxu0
    %176 = vmatpush.msra.mxu0 %v147
    %177 = vmatpush.msra.mxu0 %v145
    %178 = vmatpush.msra.mxu0 %v143
    %179 = vmatpush.msra.mxu0 %v141
    %180 = vmatpush.msra.mxu0 %v139
    %181 = vmatpush.msra.mxu0 %v137
    %182 = vmatpush.msra.mxu0 %v135
    %183 = vmatpush.msra.mxu0 %v133
    %184 = vmatpush.msra.mxu0 %v131
    %185 = vmatpush.msra.mxu0 %v129
    %186 = vmatpush.msra.mxu0 %v127
    %187 = vmatpush.msra.mxu0 %v125
    %188 = vmatpush.msra.mxu0 %v123
    %189 = vmatpush.msra.mxu0 %v121
    %190 = vmatpush.msra.mxu0 %v119
    %191 = vmatpush.msra.mxu0 %v117
    %192 = vmatmul.f32.gmra.mxu0 %v115
    %v193 = vpop.f32.mrf.mxu0
    %v194 = vadd.f32 %v153, %v193
    %195 = vdwg.mxu0
    %v196 = vld [vmem:[%s4] sm:$0x3]
    %v198 = vperm.slane %v196, 0
    %v199 = vperm.slane %v196, 1
    %v202 = vadd.f32 %v174, %v198
    %v203 = vadd.f32 %v194, %v199
    %v204 = vmin.f32 %v202, 0.0
    %v205 = vmin.f32 %v203, 0.0
    %v206 = vmul.f32 %v204, 1.442695
    %v207 = vpow.pop %v206
    %v208 = vmul.f32 %v205, 1.442695
    %v209 = vpow.pop %v208
    %v210 = vsub.f32 %v207, 1.0
    %v211 = vsub.f32 %v209, 1.0
    %v212 = vmul.f32 %v210, 1.6732632
    %v213 = vmul.f32 %v211, 1.6732632
    %v214 = vmax.f32 %v202, 0.0
    %v215 = vmax.f32 %v203, 0.0
    %v216 = vadd.f32 %v214, %v212
    %v217 = vadd.f32 %v215, %v213
    %v218 = vmul.f32 %v216, 1.050701
    %v219 = vmul.f32 %v217, 1.050701
    %v220 = vld [vmem:[#allocation9] sm:$0xff]
    %v221 = vld [vmem:[#allocation9 + $0x8] sm:$0xff]
    %v222 = vld [vmem:[#allocation9 + $0x10] sm:$0xff]
    %v223 = vld [vmem:[#allocation9 + $0x18] sm:$0xff]
    %v224 = vld [vmem:[#allocation9 + $0x20] sm:$0xff]
    %v225 = vld [vmem:[#allocation9 + $0x28] sm:$0xff]
    %v226 = vld [vmem:[#allocation9 + $0x30] sm:$0xff]
    %v227 = vld [vmem:[#allocation9 + $0x38] sm:$0xff]
    %v228 = vld [vmem:[#allocation9 + $0x40] sm:$0xff]
    %v229 = vld [vmem:[#allocation9 + $0x48] sm:$0xff]
    %v230 = vld [vmem:[#allocation9 + $0x50] sm:$0xff]
    %v231 = vld [vmem:[#allocation9 + $0x58] sm:$0xff]
    %v232 = vld [vmem:[#allocation9 + $0x60] sm:$0xff]
    %v233 = vld [vmem:[#allocation9 + $0x68] sm:$0xff]
    %v234 = vld [vmem:[#allocation9 + $0x70] sm:$0xff]
    %v235 = vld [vmem:[#allocation9 + $0x78] sm:$0xff]
    %v236 = vld [vmem:[#allocation9 + $0x80] sm:$0xff]
    %v237 = vld [vmem:[#allocation9 + $0x88] sm:$0xff]
    %v238 = vld [vmem:[#allocation9 + $0x90] sm:$0xff]
    %v239 = vld [vmem:[#allocation9 + $0x98] sm:$0xff]
    %v240 = vld [vmem:[#allocation9 + $0xa0] sm:$0xff]
    %v241 = vld [vmem:[#allocation9 + $0xa8] sm:$0xff]
    %v242 = vld [vmem:[#allocation9 + $0xb0] sm:$0xff]
    %v243 = vld [vmem:[#allocation9 + $0xb8] sm:$0xff]
    %v244 = vld [vmem:[#allocation9 + $0xc0] sm:$0xff]
    %v245 = vld [vmem:[#allocation9 + $0xc8] sm:$0xff]
    %v246 = vld [vmem:[#allocation9 + $0xd0] sm:$0xff]
    %v247 = vld [vmem:[#allocation9 + $0xd8] sm:$0xff]
    %v248 = vld [vmem:[#allocation9 + $0xe0] sm:$0xff]
    %v249 = vld [vmem:[#allocation9 + $0xe8] sm:$0xff]
    %v250 = vld [vmem:[#allocation9 + $0xf0] sm:$0xff]
    %v251 = vld [vmem:[#allocation9 + $0xf8] sm:$0xff]
    %v252 = vld [vmem:[#allocation9 + $0x100] sm:$0xff]
    %v253 = vld [vmem:[#allocation9 + $0x108] sm:$0xff]
    %v254 = vld [vmem:[#allocation9 + $0x110] sm:$0xff]
    %v255 = vld [vmem:[#allocation9 + $0x118] sm:$0xff]
    %v256 = vld [vmem:[#allocation9 + $0x120] sm:$0xff]
    %v257 = vld [vmem:[#allocation9 + $0x128] sm:$0xff]
    %v258 = vld [vmem:[#allocation9 + $0x130] sm:$0xff]
    %v259 = vld [vmem:[#allocation9 + $0x138] sm:$0xff]
    %v260 = vld [vmem:[#allocation9 + $0x140] sm:$0xff]
    %v261 = vld [vmem:[#allocation9 + $0x148] sm:$0xff]
    %v262 = vld [vmem:[#allocation9 + $0x150] sm:$0xff]
    %v263 = vld [vmem:[#allocation9 + $0x158] sm:$0xff]
    %v264 = vld [vmem:[#allocation9 + $0x160] sm:$0xff]
    %v265 = vld [vmem:[#allocation9 + $0x168] sm:$0xff]
    %v266 = vld [vmem:[#allocation9 + $0x170] sm:$0xff]
    %v267 = vld [vmem:[#allocation9 + $0x178] sm:$0xff]
    %v268 = vld [vmem:[#allocation9 + $0x180] sm:$0xff]
    %v269 = vld [vmem:[#allocation9 + $0x188] sm:$0xff]
    %v270 = vld [vmem:[#allocation9 + $0x190] sm:$0xff]
    %v271 = vld [vmem:[#allocation9 + $0x198] sm:$0xff]
    %v272 = vld [vmem:[#allocation9 + $0x1a0] sm:$0xff]
    %v273 = vld [vmem:[#allocation9 + $0x1a8] sm:$0xff]
    %v274 = vld [vmem:[#allocation9 + $0x1b0] sm:$0xff]
    %v275 = vld [vmem:[#allocation9 + $0x1b8] sm:$0xff]
    %v276 = vld [vmem:[#allocation9 + $0x1c0] sm:$0xff]
    %v277 = vld [vmem:[#allocation9 + $0x1c8] sm:$0xff]
    %v278 = vld [vmem:[#allocation9 + $0x1d0] sm:$0xff]
    %v279 = vld [vmem:[#allocation9 + $0x1d8] sm:$0xff]
    %v280 = vld [vmem:[#allocation9 + $0x1e0] sm:$0xff]
    %v281 = vld [vmem:[#allocation9 + $0x1e8] sm:$0xff]
    %v282 = vld [vmem:[#allocation9 + $0x1f0] sm:$0xff]
    %v283 = vld [vmem:[#allocation9 + $0x1f8] sm:$0xff]
    %v284 = vld [vmem:[%s6] sm:$0x3]
    %v286 = vperm.slane %v284, 0
    %v287 = vperm.slane %v284, 1
    %290 = vmatpush.msra.mxu0 %v250
    %291 = vmatpush.msra.mxu0 %v248
    %292 = vmatpush.msra.mxu0 %v246
    %293 = vmatpush.msra.mxu0 %v244
    %294 = vmatpush.msra.mxu0 %v242
    %295 = vmatpush.msra.mxu0 %v240
    %296 = vmatpush.msra.mxu0 %v238
    %297 = vmatpush.msra.mxu0 %v236
    %298 = vmatpush.msra.mxu0 %v234
    %299 = vmatpush.msra.mxu0 %v232
    %300 = vmatpush.msra.mxu0 %v230
    %301 = vmatpush.msra.mxu0 %v228
    %302 = vmatpush.msra.mxu0 %v226
    %303 = vmatpush.msra.mxu0 %v224
    %304 = vmatpush.msra.mxu0 %v222
    %305 = vmatpush.msra.mxu0 %v220
    %306 = vmatmul.f32.gmra.mxu0 %v218
    %v307 = vpop.f32.mrf.mxu0
    %v308 = vadd.f32 %v286, %v307
    %309 = vdwg.mxu0
    %310 = vmatpush.msra.mxu0 %v282
    %311 = vmatpush.msra.mxu0 %v280
    %312 = vmatpush.msra.mxu0 %v278
    %313 = vmatpush.msra.mxu0 %v276
    %314 = vmatpush.msra.mxu0 %v274
    %315 = vmatpush.msra.mxu0 %v272
    %316 = vmatpush.msra.mxu0 %v270
    %317 = vmatpush.msra.mxu0 %v268
    %318 = vmatpush.msra.mxu0 %v266
    %319 = vmatpush.msra.mxu0 %v264
    %320 = vmatpush.msra.mxu0 %v262
    %321 = vmatpush.msra.mxu0 %v260
    %322 = vmatpush.msra.mxu0 %v258
    %323 = vmatpush.msra.mxu0 %v256
    %324 = vmatpush.msra.mxu0 %v254
    %325 = vmatpush.msra.mxu0 %v252
    %326 = vmatmul.f32.gmra.mxu0 %v219
    %v327 = vpop.f32.mrf.mxu0
    %v328 = vadd.f32 %v308, %v327
    %329 = vdwg.mxu0
    %330 = vmatpush.msra.mxu0 %v251
    %331 = vmatpush.msra.mxu0 %v249
    %332 = vmatpush.msra.mxu0 %v247
    %333 = vmatpush.msra.mxu0 %v245
    %334 = vmatpush.msra.mxu0 %v243
    %335 = vmatpush.msra.mxu0 %v241
    %336 = vmatpush.msra.mxu0 %v239
    %337 = vmatpush.msra.mxu0 %v237
    %338 = vmatpush.msra.mxu0 %v235
    %339 = vmatpush.msra.mxu0 %v233
    %340 = vmatpush.msra.mxu0 %v231
    %341 = vmatpush.msra.mxu0 %v229
    %342 = vmatpush.msra.mxu0 %v227
    %343 = vmatpush.msra.mxu0 %v225
    %344 = vmatpush.msra.mxu0 %v223
    %345 = vmatpush.msra.mxu0 %v221
    %346 = vmatmul.f32.gmra.mxu0 %v218
    %v347 = vpop.f32.mrf.mxu0
    %v348 = vadd.f32 %v287, %v347
    %349 = vdwg.mxu0
    %350 = vmatpush.msra.mxu0 %v283
    %351 = vmatpush.msra.mxu0 %v281
    %352 = vmatpush.msra.mxu0 %v279
    %353 = vmatpush.msra.mxu0 %v277
    %354 = vmatpush.msra.mxu0 %v275
    %355 = vmatpush.msra.mxu0 %v273
    %356 = vmatpush.msra.mxu0 %v271
    %357 = vmatpush.msra.mxu0 %v269
    %358 = vmatpush.msra.mxu0 %v267
    %359 = vmatpush.msra.mxu0 %v265
    %360 = vmatpush.msra.mxu0 %v263
    %361 = vmatpush.msra.mxu0 %v261
    %362 = vmatpush.msra.mxu0 %v259
    %363 = vmatpush.msra.mxu0 %v257
    %364 = vmatpush.msra.mxu0 %v255
    %365 = vmatpush.msra.mxu0 %v253
    %366 = vmatmul.f32.gmra.mxu0 %v219
    %v367 = vpop.f32.mrf.mxu0
    %v368 = vadd.f32 %v348, %v367
    %369 = vdwg.mxu0
    %v370 = vmin.f32 %v328, 0.0
    %v371 = vmin.f32 %v368, 0.0
    %v372 = vmul.f32 %v370, 1.442695
    %v373 = vpow.pop %v372
    %v374 = vmul.f32 %v371, 1.442695
    %v375 = vpow.pop %v374
    %v376 = vsub.f32 %v373, 1.0
    %v377 = vsub.f32 %v375, 1.0
    %v378 = vmul.f32 %v376, 1.6732632
    %v379 = vmul.f32 %v377, 1.6732632
    %v380 = vmax.f32 %v328, 0.0
    %v381 = vmax.f32 %v368, 0.0
    %v382 = vadd.f32 %v380, %v378
    %v383 = vadd.f32 %v381, %v379
    %v384 = vmul.f32 %v382, 1.050701
    %v385 = vmul.f32 %v383, 1.050701
    %v386 = vld [vmem:[#allocation10] sm:$0xff]
    %v387 = vld [vmem:[#allocation10 + $0x8] sm:$0xff]
    %v388 = vld [vmem:[#allocation10 + $0x10] sm:$0xff]
    %v389 = vld [vmem:[#allocation10 + $0x18] sm:$0xff]
    %v390 = vld [vmem:[#allocation10 + $0x20] sm:$0xff]
    %v391 = vld [vmem:[#allocation10 + $0x28] sm:$0xff]
    %v392 = vld [vmem:[#allocation10 + $0x30] sm:$0xff]
    %v393 = vld [vmem:[#allocation10 + $0x38] sm:$0xff]
    %v394 = vld [vmem:[#allocation10 + $0x40] sm:$0xff]
    %v395 = vld [vmem:[#allocation10 + $0x48] sm:$0xff]
    %v396 = vld [vmem:[#allocation10 + $0x50] sm:$0xff]
    %v397 = vld [vmem:[#allocation10 + $0x58] sm:$0xff]
    %v398 = vld [vmem:[#allocation10 + $0x60] sm:$0xff]
    %v399 = vld [vmem:[#allocation10 + $0x68] sm:$0xff]
    %v400 = vld [vmem:[#allocation10 + $0x70] sm:$0xff]
    %v401 = vld [vmem:[#allocation10 + $0x78] sm:$0xff]
    %v402 = vld [vmem:[#allocation10 + $0x80] sm:$0xff]
    %v403 = vld [vmem:[#allocation10 + $0x88] sm:$0xff]
    %v404 = vld [vmem:[#allocation10 + $0x90] sm:$0xff]
    %v405 = vld [vmem:[#allocation10 + $0x98] sm:$0xff]
    %v406 = vld [vmem:[#allocation10 + $0xa0] sm:$0xff]
    %v407 = vld [vmem:[#allocation10 + $0xa8] sm:$0xff]
    %v408 = vld [vmem:[#allocation10 + $0xb0] sm:$0xff]
    %v409 = vld [vmem:[#allocation10 + $0xb8] sm:$0xff]
    %v410 = vld [vmem:[#allocation10 + $0xc0] sm:$0xff]
    %v411 = vld [vmem:[#allocation10 + $0xc8] sm:$0xff]
    %v412 = vld [vmem:[#allocation10 + $0xd0] sm:$0xff]
    %v413 = vld [vmem:[#allocation10 + $0xd8] sm:$0xff]
    %v414 = vld [vmem:[#allocation10 + $0xe0] sm:$0xff]
    %v415 = vld [vmem:[#allocation10 + $0xe8] sm:$0xff]
    %v416 = vld [vmem:[#allocation10 + $0xf0] sm:$0xff]
    %v417 = vld [vmem:[#allocation10 + $0xf8] sm:$0xff]
    %v418 = vld [vmem:[#allocation10 + $0x100] sm:$0xff]
    %v419 = vld [vmem:[#allocation10 + $0x108] sm:$0xff]
    %v420 = vld [vmem:[#allocation10 + $0x110] sm:$0xff]
    %v421 = vld [vmem:[#allocation10 + $0x118] sm:$0xff]
    %v422 = vld [vmem:[#allocation10 + $0x120] sm:$0xff]
    %v423 = vld [vmem:[#allocation10 + $0x128] sm:$0xff]
    %v424 = vld [vmem:[#allocation10 + $0x130] sm:$0xff]
    %v425 = vld [vmem:[#allocation10 + $0x138] sm:$0xff]
    %v426 = vld [vmem:[#allocation10 + $0x140] sm:$0xff]
    %v427 = vld [vmem:[#allocation10 + $0x148] sm:$0xff]
    %v428 = vld [vmem:[#allocation10 + $0x150] sm:$0xff]
    %v429 = vld [vmem:[#allocation10 + $0x158] sm:$0xff]
    %v430 = vld [vmem:[#allocation10 + $0x160] sm:$0xff]
    %v431 = vld [vmem:[#allocation10 + $0x168] sm:$0xff]
    %v432 = vld [vmem:[#allocation10 + $0x170] sm:$0xff]
    %v433 = vld [vmem:[#allocation10 + $0x178] sm:$0xff]
    %v434 = vld [vmem:[#allocation10 + $0x180] sm:$0xff]
    %v435 = vld [vmem:[#allocation10 + $0x188] sm:$0xff]
    %v436 = vld [vmem:[#allocation10 + $0x190] sm:$0xff]
    %v437 = vld [vmem:[#allocation10 + $0x198] sm:$0xff]
    %v438 = vld [vmem:[#allocation10 + $0x1a0] sm:$0xff]
    %v439 = vld [vmem:[#allocation10 + $0x1a8] sm:$0xff]
    %v440 = vld [vmem:[#allocation10 + $0x1b0] sm:$0xff]
    %v441 = vld [vmem:[#allocation10 + $0x1b8] sm:$0xff]
    %v442 = vld [vmem:[#allocation10 + $0x1c0] sm:$0xff]
    %v443 = vld [vmem:[#allocation10 + $0x1c8] sm:$0xff]
    %v444 = vld [vmem:[#allocation10 + $0x1d0] sm:$0xff]
    %v445 = vld [vmem:[#allocation10 + $0x1d8] sm:$0xff]
    %v446 = vld [vmem:[#allocation10 + $0x1e0] sm:$0xff]
    %v447 = vld [vmem:[#allocation10 + $0x1e8] sm:$0xff]
    %v448 = vld [vmem:[#allocation10 + $0x1f0] sm:$0xff]
    %v449 = vld [vmem:[#allocation10 + $0x1f8] sm:$0xff]
    %v450 = vld [vmem:[%s8] sm:$0x3]
    %v452 = vperm.slane %v450, 0
    %v453 = vperm.slane %v450, 1
    %456 = vmatpush.msra.mxu0 %v416
    %457 = vmatpush.msra.mxu0 %v414
    %458 = vmatpush.msra.mxu0 %v412
    %459 = vmatpush.msra.mxu0 %v410
    %460 = vmatpush.msra.mxu0 %v408
    %461 = vmatpush.msra.mxu0 %v406
    %462 = vmatpush.msra.mxu0 %v404
    %463 = vmatpush.msra.mxu0 %v402
    %464 = vmatpush.msra.mxu0 %v400
    %465 = vmatpush.msra.mxu0 %v398
    %466 = vmatpush.msra.mxu0 %v396
    %467 = vmatpush.msra.mxu0 %v394
    %468 = vmatpush.msra.mxu0 %v392
    %469 = vmatpush.msra.mxu0 %v390
    %470 = vmatpush.msra.mxu0 %v388
    %471 = vmatpush.msra.mxu0 %v386
    %472 = vmatmul.f32.gmra.mxu0 %v384
    %v473 = vpop.f32.mrf.mxu0
    %v474 = vadd.f32 %v452, %v473
    %475 = vdwg.mxu0
    %476 = vmatpush.msra.mxu0 %v448
    %477 = vmatpush.msra.mxu0 %v446
    %478 = vmatpush.msra.mxu0 %v444
    %479 = vmatpush.msra.mxu0 %v442
    %480 = vmatpush.msra.mxu0 %v440
    %481 = vmatpush.msra.mxu0 %v438
    %482 = vmatpush.msra.mxu0 %v436
    %483 = vmatpush.msra.mxu0 %v434
    %484 = vmatpush.msra.mxu0 %v432
    %485 = vmatpush.msra.mxu0 %v430
    %486 = vmatpush.msra.mxu0 %v428
    %487 = vmatpush.msra.mxu0 %v426
    %488 = vmatpush.msra.mxu0 %v424
    %489 = vmatpush.msra.mxu0 %v422
    %490 = vmatpush.msra.mxu0 %v420
    %491 = vmatpush.msra.mxu0 %v418
    %492 = vmatmul.f32.gmra.mxu0 %v385
    %v493 = vpop.f32.mrf.mxu0
    %v494 = vadd.f32 %v474, %v493
    %495 = vdwg.mxu0
    %496 = vmatpush.msra.mxu0 %v417
    %497 = vmatpush.msra.mxu0 %v415
    %498 = vmatpush.msra.mxu0 %v413
    %499 = vmatpush.msra.mxu0 %v411
    %500 = vmatpush.msra.mxu0 %v409
    %501 = vmatpush.msra.mxu0 %v407
    %502 = vmatpush.msra.mxu0 %v405
    %503 = vmatpush.msra.mxu0 %v403
    %504 = vmatpush.msra.mxu0 %v401
    %505 = vmatpush.msra.mxu0 %v399
    %506 = vmatpush.msra.mxu0 %v397
    %507 = vmatpush.msra.mxu0 %v395
    %508 = vmatpush.msra.mxu0 %v393
    %509 = vmatpush.msra.mxu0 %v391
    %510 = vmatpush.msra.mxu0 %v389
    %511 = vmatpush.msra.mxu0 %v387
    %512 = vmatmul.f32.gmra.mxu0 %v384
    %v513 = vpop.f32.mrf.mxu0
    %v514 = vadd.f32 %v453, %v513
    %515 = vdwg.mxu0
    %516 = vmatpush.msra.mxu0 %v449
    %517 = vmatpush.msra.mxu0 %v447
    %518 = vmatpush.msra.mxu0 %v445
    %519 = vmatpush.msra.mxu0 %v443
    %520 = vmatpush.msra.mxu0 %v441
    %521 = vmatpush.msra.mxu0 %v439
    %522 = vmatpush.msra.mxu0 %v437
    %523 = vmatpush.msra.mxu0 %v435
    %524 = vmatpush.msra.mxu0 %v433
    %525 = vmatpush.msra.mxu0 %v431
    %526 = vmatpush.msra.mxu0 %v429
    %527 = vmatpush.msra.mxu0 %v427
    %528 = vmatpush.msra.mxu0 %v425
    %529 = vmatpush.msra.mxu0 %v423
    %530 = vmatpush.msra.mxu0 %v421
    %531 = vmatpush.msra.mxu0 %v419
    %532 = vmatmul.f32.gmra.mxu0 %v385
    %v533 = vpop.f32.mrf.mxu0
    %v534 = vadd.f32 %v514, %v533
    %535 = vdwg.mxu0
    %v536 = vmin.f32 %v494, 0.0
    %v537 = vmin.f32 %v534, 0.0
    %v538 = vmul.f32 %v536, 1.442695
    %v539 = vpow.pop %v538
    %v540 = vmul.f32 %v537, 1.442695
    %v541 = vpow.pop %v540
    %v542 = vsub.f32 %v539, 1.0
    %v543 = vsub.f32 %v541, 1.0
    %v544 = vmul.f32 %v542, 1.6732632
    %v545 = vmul.f32 %v543, 1.6732632
    %v546 = vmax.f32 %v494, 0.0
    %v547 = vmax.f32 %v534, 0.0
    %v548 = vadd.f32 %v546, %v544
    %v549 = vadd.f32 %v547, %v545
    %v550 = vmul.f32 %v548, 1.050701
    %v551 = vmul.f32 %v549, 1.050701
    %v552 = vld [vmem:[#allocation12] sm:$0xff]
    %v553 = vld [vmem:[#allocation12 + $0x8] sm:$0xff]
    %v554 = vld [vmem:[#allocation12 + $0x10] sm:$0xff]
    %v555 = vld [vmem:[#allocation12 + $0x18] sm:$0xff]
    %v556 = vld [vmem:[#allocation12 + $0x20] sm:$0xff]
    %v557 = vld [vmem:[#allocation12 + $0x28] sm:$0xff]
    %v558 = vld [vmem:[#allocation12 + $0x30] sm:$0xff]
    %v559 = vld [vmem:[#allocation12 + $0x38] sm:$0xff]
    %v560 = vld [vmem:[#allocation12 + $0x40] sm:$0xff]
    %v561 = vld [vmem:[#allocation12 + $0x48] sm:$0xff]
    %v562 = vld [vmem:[#allocation12 + $0x50] sm:$0xff]
    %v563 = vld [vmem:[#allocation12 + $0x58] sm:$0xff]
    %v564 = vld [vmem:[#allocation12 + $0x60] sm:$0xff]
    %v565 = vld [vmem:[#allocation12 + $0x68] sm:$0xff]
    %v566 = vld [vmem:[#allocation12 + $0x70] sm:$0xff]
    %v567 = vld [vmem:[#allocation12 + $0x78] sm:$0xff]
    %v568 = vld [vmem:[#allocation12 + $0x80] sm:$0xff]
    %v569 = vld [vmem:[#allocation12 + $0x88] sm:$0xff]
    %v570 = vld [vmem:[#allocation12 + $0x90] sm:$0xff]
    %v571 = vld [vmem:[#allocation12 + $0x98] sm:$0xff]
    %v572 = vld [vmem:[#allocation12 + $0xa0] sm:$0xff]
    %v573 = vld [vmem:[#allocation12 + $0xa8] sm:$0xff]
    %v574 = vld [vmem:[#allocation12 + $0xb0] sm:$0xff]
    %v575 = vld [vmem:[#allocation12 + $0xb8] sm:$0xff]
    %v576 = vld [vmem:[#allocation12 + $0xc0] sm:$0xff]
    %v577 = vld [vmem:[#allocation12 + $0xc8] sm:$0xff]
    %v578 = vld [vmem:[#allocation12 + $0xd0] sm:$0xff]
    %v579 = vld [vmem:[#allocation12 + $0xd8] sm:$0xff]
    %v580 = vld [vmem:[#allocation12 + $0xe0] sm:$0xff]
    %v581 = vld [vmem:[#allocation12 + $0xe8] sm:$0xff]
    %v582 = vld [vmem:[#allocation12 + $0xf0] sm:$0xff]
    %v583 = vld [vmem:[#allocation12 + $0xf8] sm:$0xff]
    %v584 = vld [vmem:[%s10] sm:$0x1]
    %585 = vmatpush.msra.mxu0 %v567
    %586 = vmatpush.msra.mxu0 %v566
    %587 = vmatpush.msra.mxu0 %v565
    %588 = vmatpush.msra.mxu0 %v564
    %589 = vmatpush.msra.mxu0 %v563
    %590 = vmatpush.msra.mxu0 %v562
    %591 = vmatpush.msra.mxu0 %v561
    %592 = vmatpush.msra.mxu0 %v560
    %593 = vmatpush.msra.mxu0 %v559
    %594 = vmatpush.msra.mxu0 %v558
    %595 = vmatpush.msra.mxu0 %v557
    %596 = vmatpush.msra.mxu0 %v556
    %597 = vmatpush.msra.mxu0 %v555
    %598 = vmatpush.msra.mxu0 %v554
    %599 = vmatpush.msra.mxu0 %v553
    %600 = vmatpush.msra.mxu0 %v552
    %601 = vmatmul.f32.gmra.mxu0 %v550
    %v602 = vpop.f32.mrf.mxu0
    %v603 = vadd.f32 %v584, %v602
    %604 = vdwg.mxu0
    %605 = vmatpush.msra.mxu0 %v583
    %606 = vmatpush.msra.mxu0 %v582
    %607 = vmatpush.msra.mxu0 %v581
    %608 = vmatpush.msra.mxu0 %v580
    %609 = vmatpush.msra.mxu0 %v579
    %610 = vmatpush.msra.mxu0 %v578
    %611 = vmatpush.msra.mxu0 %v577
    %612 = vmatpush.msra.mxu0 %v576
    %613 = vmatpush.msra.mxu0 %v575
    %614 = vmatpush.msra.mxu0 %v574
    %615 = vmatpush.msra.mxu0 %v573
    %616 = vmatpush.msra.mxu0 %v572
    %617 = vmatpush.msra.mxu0 %v571
    %618 = vmatpush.msra.mxu0 %v570
    %619 = vmatpush.msra.mxu0 %v569
    %620 = vmatpush.msra.mxu0 %v568
    %621 = vmatmul.f32.gmra.mxu0 %v551
    %v622 = vpop.f32.mrf.mxu0
    %v623 = vadd.f32 %v603, %v622
    %624 = vdwg.mxu0
    %625 = vst [vmem:[#allocation13] sm:$0x1] %v623
    // Predicated region
    $region62: #{tpu_custom_call.1} parent=1 // pred_check
      _
    $region63: #{tpu_custom_call.1} parent=1 // pred_check_branch
      %627 = sbr.rel (0) target = $region65
    $region64: #{tpu_custom_call.1} parent=1 // pred_region
      %629 = vsyncadd [#allocation6], 0
      %s631 = sshll.u32 [#allocation13], 4
      %s632 = int_to_ptr.vmem [resolvable:$true] %s631
      %s633 = sshll.u32 %s11, 4
      %s634 = int_to_ptr.hbm [resolvable:$true] %s633
      %636 = dma.vmem_to_hbm [thread:$0]  %s632, 16, %s634, [#allocation6]
    $region65: #{tpu_custom_call.1} parent=1 // pred_fallthru
      _
    // Predicated region
    $region66: #{tpu_custom_call.1} parent=1 // pred_check
      _
    $region67: #{tpu_custom_call.1} parent=1 // pred_check_branch
      %638 = sbr.rel (0) target = $region69
    $region68: #{tpu_custom_call.1} parent=1 // pred_region
      %640 = dma.done [#allocation6], 16
    $region69: #{tpu_custom_call.1} parent=1 // pred_fallthru
      _
    %641 = vsyncpa [#allocation5], 1
    %642 = vsyncpa [#allocation8], 1
    %643 = vsyncpa [#allocation11], 1
    %644 = vsyncpa [#allocation6], 1

</llo_original>
